<compile_context>
chip_gen: v7x
topology: tpu7x:2x2x1
jax: 0.10.0
libtpu: 0.0.40
codegen_flags: <defaults>
</compile_context>

<pallas_src>
import jax
import jax.numpy as jnp
from jax import lax
from jax.experimental import pallas as pl
from jax.experimental.pallas import tpu as pltpu


def _round_up(x, m):
    return ((x + m - 1) // m) * m


def _cdiv(a, b):
    return -(-a // b)


def _num_tensorcores():
    """Trace-time TensorCore count (v7x has 2). Fall back to 1 on any surprise."""
    try:
        info = pltpu.get_tpu_info()
        for attr in ("num_cores", "num_tensorcores", "tensorcores_per_chip",
                     "cores_per_chip", "core_count"):
            n = getattr(info, attr, None)
            if isinstance(n, int) and n > 0:
                return n
    except Exception:
        pass
    return 1


def _row_tile(mp, dp, itemsize, num_cores):
    """Packed-row tile: VMEM-bounded, sublane-aligned (multiple of 8).

    Budget ~12 MiB for ~4 live pipeline buffers (double-buffered input +
    output of (tm, dp)) so it fits even v5e's 16 MiB scoped-VMEM default.
    Only split a small problem across grid steps when there are >=2 TCs,
    and then split into near-equal tiles.
    """
    budget = 12 << 20
    cap = max(8, ((budget // (4 * dp * itemsize)) // 8) * 8)
    cap = min(cap, 4096)
    tm = min(cap, _round_up(mp, 8))
    if num_cores >= 2 and mp > 8:
        groups = max(1, _cdiv(mp, cap * num_cores))   # steps per core
        steps = groups * num_cores
        tm_even = _round_up(_cdiv(mp, steps), 8)
        tm = max(8, min(tm, tm_even))
    return tm


def decoding_kernel(x_ref, w_ref, b_ref, o_ref):
    # x_ref: (TM, Din)  w_ref: (Din, Dout) pre-transposed (y = x @ w)  b_ref: (1, Dout)
    o_ref[...] = (
        jnp.dot(x_ref[...], w_ref[...], preferred_element_type=jnp.float32)
        + b_ref[...]
    ).astype(o_ref.dtype)


def decoding_layer(ode_out, w1, b1, w2, b2, *, use_bf16=False):
    """DecodingLayer forward: two stacked Linear(D, D) on the trailing dim."""
    *lead, D = ode_out.shape
    M = 1
    for s in lead:
        M *= s

    # ---- one-time parameter fold (plain JAX; constant-folds / fuses under jit) ----
    wc = jnp.dot(w2, w1, precision=lax.Precision.HIGHEST)            # (D, D) [out, in]
    bc = jnp.dot(b1, w2.T, precision=lax.Precision.HIGHEST) + b2     # (D,)
    wct = wc.T                                                       # y = x @ wct + bc

    x2d = ode_out.reshape(M, D)

    # ---- lane-dense packing --------------------------------------------------
    if D < 128 and 128 % D == 0:
        # (M, D) f32 row-major == (M/P, 128): full-lane loads/stores, block-diag weight.
        P = 128 // D
        Din = Dout_p = 128
        w_packed = jnp.kron(jnp.eye(P, dtype=wct.dtype), wct)        # (128, 128)
        b_packed = jnp.tile(bc, P).reshape(1, Dout_p).astype(jnp.float32)
        pad_rows = (-M) % P                                          # <= P-1 rows only
        if pad_rows:
            x2d = jnp.pad(x2d, ((0, pad_rows), (0, 0)))
        Mp = (M + pad_rows) // P
        x_in = x2d.reshape(Mp, Din)
    else:
        # Fallback: keep rows unpacked, but pad the OUTPUT dim to full lanes so
        # stores are unmasked; extra columns sliced off below.
        P = 1
        Din = D
        Dout_p = _round_up(D, 128)
        w_packed = wct
        b_packed = bc.reshape(1, D).astype(jnp.float32)
        if Dout_p != D:
            w_packed = jnp.pad(w_packed, ((0, 0), (0, Dout_p - D)))
            b_packed = jnp.pad(b_packed, ((0, 0), (0, Dout_p - D)))
        Mp = M
        x_in = x2d

    if use_bf16:
        # Optional bandwidth lever (breaks the strict f32 tolerance check).
        x_in = x_in.astype(jnp.bfloat16)
        w_packed = w_packed.astype(jnp.bfloat16)

    num_cores = _num_tensorcores()
    itemsize = jnp.dtype(x_in.dtype).itemsize
    tm = _row_tile(Mp, max(Din, Dout_p), itemsize, num_cores)
    grid_m = pl.cdiv(Mp, tm)   # last block may be ragged; Pallas clips it

    out_packed = pl.pallas_call(
        decoding_kernel,
        out_shape=jax.ShapeDtypeStruct((Mp, Dout_p), ode_out.dtype),
        grid_spec=pltpu.PrefetchScalarGridSpec(
            num_scalar_prefetch=0,
            grid=(grid_m,),
            in_specs=[
                pl.BlockSpec((tm, Din), lambda i: (i, 0)),        # activations
                pl.BlockSpec((Din, Dout_p), lambda i: (0, 0)),    # folded weight (resident)
                pl.BlockSpec((1, Dout_p), lambda i: (0, 0)),      # folded bias   (resident)
            ],
            out_specs=pl.BlockSpec((tm, Dout_p), lambda i: (i, 0)),
        ),
        compiler_params=pltpu.CompilerParams(
            dimension_semantics=("parallel",)),
    )(x_in, w_packed, b_packed)

    if P > 1:
        out = out_packed.reshape(Mp * P, D)[:M]
    else:
        out = out_packed[:, :D]
    return out.reshape(*lead, D)


def init_linear_params(key, in_dim, out_dim):
    # Deterministic, PyTorch-Linear-style uniform(-1/sqrt(in), 1/sqrt(in)) init.
    kw, kb = jax.random.split(key)
    bound = 1.0 / (in_dim ** 0.5)
    w = jax.random.uniform(kw, (out_dim, in_dim), jnp.float32, -bound, bound)
    b = jax.random.uniform(kb, (out_dim,), jnp.float32, -bound, bound)
    return w, b


if __name__ == "__main__":
    key = jax.random.PRNGKey(0)
    k_x, k_l1, k_l2 = jax.random.split(key, 3)

    B, N, D = 2, 64, 32            # input_dim = 32 -> M = 128 rows -> 32 packed rows
    ode_out = jax.random.normal(k_x, (B, N, D), jnp.float32)

    w1, b1 = init_linear_params(k_l1, D, D)
    w2, b2 = init_linear_params(k_l2, D, D)

    fwd = jax.jit(decoding_layer)   # fold / kron / tile traced once under jit
    adj = jax.block_until_ready(fwd(ode_out, w1, b1, w2, b2))

    # Pure-JAX reference (same semantics as the PyTorch module: two Linears).
    h_ref = jnp.dot(ode_out, w1.T, precision=lax.Precision.HIGHEST) + b1
    ref = jnp.dot(h_ref, w2.T, precision=lax.Precision.HIGHEST) + b2
    assert adj.shape == (B, N, D)
    # Slightly relaxed tolerance: the weight fold changes f32 summation order.
    assert jnp.allclose(adj, ref, atol=1e-4, rtol=1e-4)

    print("KERNEL_OK")
</pallas_src>

<mosaic_0001>
module attributes {stable_mosaic.version = 11 : i64} {
  func.func @decoding_kernel(%arg0: i32, %arg1: memref<32x128xf32, #tpu.memory_space<vmem>>, %arg2: memref<128x128xf32, #tpu.memory_space<vmem>>, %arg3: memref<1x128xf32, #tpu.memory_space<vmem>>, %arg4: memref<32x128xf32, #tpu.memory_space<vmem>>) attributes {dimension_semantics = [#tpu.dimension_semantics<parallel>], iteration_bounds = array<i64: 1>, scalar_prefetch = 0 : i64, scratch_operands = 0 : i64, tpu.core_type = #tpu.core_type<tc>, window_params = [{transform_indices = @transform_0, window_bounds = array<i64: 32, 128>}, {pipeline_mode = #tpu.pipeline_mode<synchronous>, transform_indices = @transform_1, window_bounds = array<i64: 128, 128>}, {pipeline_mode = #tpu.pipeline_mode<synchronous>, transform_indices = @transform_2, window_bounds = array<i64: 1, 128>}, {transform_indices = @transform_3, window_bounds = array<i64: 32, 128>}]} {
    %c0 = arith.constant 0 : index
    %c0_0 = arith.constant 0 : index
    %0 = vector.load %arg1[%c0, %c0_0] : memref<32x128xf32, #tpu.memory_space<vmem>>, vector<32x128xf32>
    %c0_1 = arith.constant 0 : index
    %c0_2 = arith.constant 0 : index
    %1 = vector.load %arg2[%c0_1, %c0_2] : memref<128x128xf32, #tpu.memory_space<vmem>>, vector<128x128xf32>
    %cst = arith.constant dense<0.000000e+00> : vector<32x128xf32>
    %2 = tpu.matmul %0, %1, %cst {dimension_numbers = #tpu.dot_dimension_numbers<[1], [0], [0], [1], [0, 0, 1, 1], [], []>} : vector<32x128xf32>, vector<128x128xf32>, vector<32x128xf32> -> vector<32x128xf32>
    %c0_3 = arith.constant 0 : index
    %c0_4 = arith.constant 0 : index
    %3 = vector.load %arg3[%c0_3, %c0_4] : memref<1x128xf32, #tpu.memory_space<vmem>>, vector<1x128xf32>
    %4 = vector.broadcast %3 : vector<1x128xf32> to vector<32x128xf32>
    %5 = arith.addf %2, %4 : vector<32x128xf32>
    %c0_5 = arith.constant 0 : index
    %c0_6 = arith.constant 0 : index
    %6 = vector.load %arg4[%c0_5, %c0_6] : memref<32x128xf32, #tpu.memory_space<vmem>>, vector<32x128xf32>
    tpu.vector_store %arg4[%c0_5, %c0_6], %5 {strides = array<i32>} : memref<32x128xf32, #tpu.memory_space<vmem>>, vector<32x128xf32>,
    return
  }
  func.func @transform_0(%arg0: i32) -> (i32, i32) {
    %c0_i32 = arith.constant 0 : i32
    %c0_i32_0 = arith.constant 0 : i32
    return %arg0, %c0_i32 : i32, i32
  }
  func.func @transform_1(%arg0: i32) -> (i32, i32) {
    %c0_i32 = arith.constant 0 : i32
    %c0_i32_0 = arith.constant 0 : i32
    %c0_i32_1 = arith.constant 0 : i32
    return %c0_i32, %c0_i32_0 : i32, i32
  }
  func.func @transform_2(%arg0: i32) -> (i32, i32) {
    %c0_i32 = arith.constant 0 : i32
    %c0_i32_0 = arith.constant 0 : i32
    %c0_i32_1 = arith.constant 0 : i32
    return %c0_i32, %c0_i32_0 : i32, i32
  }
  func.func @transform_3(%arg0: i32) -> (i32, i32) {
    %c0_i32 = arith.constant 0 : i32
    %c0_i32_0 = arith.constant 0 : i32
    return %arg0, %c0_i32 : i32, i32
  }
}

</mosaic_0001>

<llo_original>
// kernel: tile.9
$region0: #{tile.9}
  %s0 = inlined_call_operand.vmem [shape: f32[4,32], index: 0, kind: input, shape index: {}]
  %s1 = inlined_call_operand.vmem [shape: f32[1,128], index: 1, kind: output, shape index: {}]
  $region1: #{tile.9} parent=0
    #allocation0 [shape = 'u8[4096]{0}', space=vmem, size = 0x1000, scoped, tag = 'scoped mem for output reshape']
    #allocation1 [shape = 'u8[4096]{0}', space=vmem, size = 0x1000, scoped, tag = 'scoped mem for input reshape']
    %s3 = sshllo.u32 0, 4
    %v4 = vld [vmem:[%s0] sm:%s3]
    %5 = vst [vmem:[#allocation1] sm:%s3] %v4
    %v6 = vld [vmem:[#allocation1] sm:$0x1]
    %vm7 = vcmask 261120
    %8 = vst.msk [vmem:[#allocation0] sm:$0x1] %vm7, %v6
    %s9 = scalar_lea.vmem [#allocation1], 3
    %v10 = vld [vmem:[%s9] sm:$0x1]
    %11 = vrot.lane.b32.xlu0 %v10, 96
    %v12 = vpop.permute.xlu0 %11
    %vm13 = vcmask 1048320
    %14 = vst.msk [vmem:[#allocation0] sm:$0x1] %vm13, %v12
    %s15 = scalar_lea.vmem [#allocation1], 2
    %v16 = vld [vmem:[%s15] sm:$0x1]
    %17 = vrot.lane.b32.xlu0 %v16, 64
    %v18 = vpop.permute.xlu0 %17
    %vm19 = vcmask 785920
    %20 = vst.msk [vmem:[#allocation0] sm:$0x1] %vm19, %v18
    %s21 = scalar_lea.vmem [#allocation1], 1
    %v22 = vld [vmem:[%s21] sm:$0x1]
    %23 = vrot.lane.b32.xlu0 %v22, 32
    %v24 = vpop.permute.xlu0 %23
    %vm25 = vcmask 523520
    %26 = vst.msk [vmem:[#allocation0] sm:$0x1] %vm25, %v24
    %s28 = sshllo.u32 0, 1
    %v30 = vld [vmem:[#allocation0] sm:%s28]
    %s31 = sshllo.u32 0, 1
    %32 = vst [vmem:[%s1] sm:%s31] %v30

// kernel: tile.8
$region0: #{tile.8}
  #allocation0 [shape = 's32[1]{0}', space=sflag, size = 0x4, scoped, tag = 'scoped memory for tile.8']
  %s0 = inlined_call_operand.vmem [shape: f32[32], index: 0, kind: input, shape index: {}]
  %s1 = inlined_call_operand.vmem [shape: f32[4,32], index: 1, kind: output, shape index: {}]
  // Predicated region
  $region2: #{tile.8} parent=0 // pred_check
    _
  $region3: #{tile.8} parent=0 // pred_check_branch
    %3 = sbr.rel (0) target = $region5
  $region4: #{tile.8} parent=0 // pred_region
    _
  $region5: #{tile.8} parent=0 // pred_fallthru
    _
  %v4 = vld [vmem:[%s0] ss:$0 sm:$0xff]
  %5 = vst [vmem:[%s1] sm:$0xf] %v4

// kernel: decoding_layer.1
$region0: #{decoding_layer.1}
  #allocation0 [shape = 'u32[]', space=smem, size = 0x4, offset = 0x4, fixed_abs, tag = 'smem constant byte address 0x4 - core index']
  #allocation1 [shape = 'u32[144,128]{1,0:T(1,128)}', space=vmem, size = 0x12000, scoped, tag = 'internal scratch']
  %s0 = inlined_call_operand.vmem [shape: f32[32,128], index: 0, kind: input, shape index: {}]
  %s1 = inlined_call_operand.vmem [shape: f32[128,128], index: 1, kind: input, shape index: {}]
  %s2 = inlined_call_operand.vmem [shape: f32[1,128], index: 2, kind: input, shape index: {}]
  %s3 = inlined_call_operand.vmem [shape: f32[32,128], index: 3, kind: output, shape index: {}]
  %s4 = sld [smem:[#allocation0]]
  $region22: #{decoding_layer.1} parent=0
    _
  %s6 = ssub.s32 1, %s4
  %s7 = scalar_select 0, %s6, %s4
  // Predicated region
  $region2: #{decoding_layer.1} parent=0 // pred_check
    _
  $region3: #{decoding_layer.1} parent=0 // pred_check_branch
    %9 = sbr.rel (0) target = $region5
  $region4: #{decoding_layer.1} parent=0 // pred_region
    _
  $region5: #{decoding_layer.1} parent=0 // pred_fallthru
    _
  // Predicated region
  $region6: #{decoding_layer.1} parent=0 // pred_check
    _
  $region7: #{decoding_layer.1} parent=0 // pred_check_branch
    %11 = sbr.rel (0) target = $region9
  $region8: #{decoding_layer.1} parent=0 // pred_region
    _
  $region9: #{decoding_layer.1} parent=0 // pred_fallthru
    _
  // Predicated region
  $region10: #{decoding_layer.1} parent=0 // pred_check
    _
  $region11: #{decoding_layer.1} parent=0 // pred_check_branch
    %13 = sbr.rel (0) target = $region13
  $region12: #{decoding_layer.1} parent=0 // pred_region
    _
  $region13: #{decoding_layer.1} parent=0 // pred_fallthru
    _
  %v14 = vld [vmem:[%s0] sm:$0xff]
  %v15 = vld [vmem:[%s0 + $0x8] sm:$0xff]
  %v16 = vld [vmem:[%s0 + $0x10] sm:$0xff]
  %v17 = vld [vmem:[%s0 + $0x18] sm:$0xff]
  %v18 = vld [vmem:[%s1] sm:$0xff]
  %v19 = vld [vmem:[%s1 + $0x8] sm:$0xff]
  %v20 = vld [vmem:[%s1 + $0x10] sm:$0xff]
  %v21 = vld [vmem:[%s1 + $0x18] sm:$0xff]
  %v22 = vld [vmem:[%s1 + $0x20] sm:$0xff]
  %v23 = vld [vmem:[%s1 + $0x28] sm:$0xff]
  %v24 = vld [vmem:[%s1 + $0x30] sm:$0xff]
  %v25 = vld [vmem:[%s1 + $0x38] sm:$0xff]
  %v26 = vld [vmem:[%s1 + $0x40] sm:$0xff]
  %v27 = vld [vmem:[%s1 + $0x48] sm:$0xff]
  %v28 = vld [vmem:[%s1 + $0x50] sm:$0xff]
  %v29 = vld [vmem:[%s1 + $0x58] sm:$0xff]
  %v30 = vld [vmem:[%s1 + $0x60] sm:$0xff]
  %v31 = vld [vmem:[%s1 + $0x68] sm:$0xff]
  %v32 = vld [vmem:[%s1 + $0x70] sm:$0xff]
  %v33 = vld [vmem:[%s1 + $0x78] sm:$0xff]
  %v34 = vld [vmem:[%s2] sm:$0x1]
  %v36 = vlaneseq
  %v37 = vshrl.u32 %v36, 7
  %v38 = vsub.s32 0, %v37
  %v39 = vrot.slane %v34, %v38
  %41 = vmatprep.subr.mxu0 0.0
  %42 = vmatpush1.msra.mxu0 %v18
  %43 = vmatprep.subr.mxu0 0.0
  %44 = vmatpush1.msra.mxu0 %v19
  %45 = vmatprep.subr.mxu0 0.0
  %46 = vmatpush1.msra.mxu0 %v20
  %47 = vmatprep.subr.mxu0 0.0
  %48 = vmatpush1.msra.mxu0 %v21
  %49 = vmatprep.subr.mxu0 0.0
  %50 = vmatpush1.msra.mxu0 %v22
  %51 = vmatprep.subr.mxu0 0.0
  %52 = vmatpush1.msra.mxu0 %v23
  %53 = vmatprep.subr.mxu0 0.0
  %54 = vmatpush1.msra.mxu0 %v24
  %55 = vmatprep.subr.mxu0 0.0
  %56 = vmatpush1.msra.mxu0 %v25
  %57 = vmatprep.subr.mxu0 0.0
  %58 = vmatpush1.msra.mxu0 %v26
  %59 = vmatprep.subr.mxu0 0.0
  %60 = vmatpush1.msra.mxu0 %v27
  %61 = vmatprep.subr.mxu0 0.0
  %62 = vmatpush1.msra.mxu0 %v28
  %63 = vmatprep.subr.mxu0 0.0
  %64 = vmatpush1.msra.mxu0 %v29
  %65 = vmatprep.subr.mxu0 0.0
  %66 = vmatpush1.msra.mxu0 %v30
  %67 = vmatprep.subr.mxu0 0.0
  %68 = vmatpush1.msra.mxu0 %v31
  %69 = vmatprep.subr.mxu0 0.0
  %70 = vmatpush1.msra.mxu0 %v32
  %71 = vmatprep.subr.mxu0 0.0
  %72 = vmatpush1.msra.mxu0 %v33
  %73 = vmatprep.subr.mxu0 0.0
  %74 = vmatpush1.msra.mxu0 0.0
  %75 = vmatprep.subr.mxu0 0.0
  %76 = vmatpush1.msra.mxu0 0.0
  %77 = vmatprep.subr.mxu0 0.0
  %78 = vmatpush1.msra.mxu0 0.0
  %79 = vmatprep.subr.mxu0 0.0
  %80 = vmatpush1.msra.mxu0 0.0
  %81 = vmatprep.subr.mxu0 0.0
  %82 = vmatpush1.msra.mxu0 0.0
  %83 = vmatprep.subr.mxu0 0.0
  %84 = vmatpush1.msra.mxu0 0.0
  %85 = vmatprep.subr.mxu0 0.0
  %86 = vmatpush1.msra.mxu0 0.0
  %87 = vmatprep.subr.mxu0 0.0
  %88 = vmatpush1.msra.mxu0 0.0
  %89 = vmatprep.subr.mxu0 0.0
  %90 = vmatpush1.msra.mxu0 0.0
  %91 = vmatprep.subr.mxu0 0.0
  %92 = vmatpush1.msra.mxu0 0.0
  %93 = vmatprep.subr.mxu0 0.0
  %94 = vmatpush1.msra.mxu0 0.0
  %95 = vmatprep.subr.mxu0 0.0
  %96 = vmatpush1.msra.mxu0 0.0
  %97 = vmatprep.subr.mxu0 0.0
  %98 = vmatpush1.msra.mxu0 0.0
  %99 = vmatprep.subr.mxu0 0.0
  %100 = vmatpush1.msra.mxu0 0.0
  %101 = vmatprep.subr.mxu0 0.0
  %102 = vmatpush1.msra.mxu0 0.0
  %103 = vmatprep.subr.mxu0 0.0
  %104 = vmatpush1.msra.mxu0 0.0
  %105 = vmatprep.mubr.f32.mxu0 0.0
  %106 = vmatmul.mubr.f32.gmra.mrb[0].mxu0 %v14
  %v107 = vpop.f32.mrb[0].mxu0
  %v108 = vadd.f32 %v39, %v107
  %v109 = vpop.f32.mrb[0].mxu0
  %110 = vmatprep.mubr.f32.mxu0 0.0
  %111 = vmatmul.mubr.f32.gmra.mrb[0].mxu0 %v15
  %v112 = vpop.f32.mrb[0].mxu0
  %v113 = vadd.f32 %v39, %v112
  %v114 = vpop.f32.mrb[0].mxu0
  %115 = vmatprep.mubr.f32.mxu0 0.0
  %116 = vmatmul.mubr.f32.gmra.mrb[0].mxu0 %v16
  %v117 = vpop.f32.mrb[0].mxu0
  %v118 = vadd.f32 %v39, %v117
  %v119 = vpop.f32.mrb[0].mxu0
  %120 = vmatprep.mubr.f32.mxu0 0.0
  %121 = vmatmul.mubr.f32.gmra.mrb[0].mxu0 %v17
  %v122 = vpop.f32.mrb[0].mxu0
  %v123 = vadd.f32 %v39, %v122
  %v124 = vpop.f32.mrb[0].mxu0
  %125 = vdwg.mxu0
  %126 = vst [vmem:[%s3] sm:$0xff] %v108
  %127 = vst [vmem:[%s3 + $0x8] sm:$0xff] %v113
  %128 = vst [vmem:[%s3 + $0x10] sm:$0xff] %v118
  %129 = vst [vmem:[%s3 + $0x18] sm:$0xff] %v123
  // Predicated region
  $region14: #{decoding_layer.1} parent=0 // pred_check
    _
  $region15: #{decoding_layer.1} parent=0 // pred_check_branch
    %131 = sbr.rel (0) target = $region17
  $region16: #{decoding_layer.1} parent=0 // pred_region
    _
  $region17: #{decoding_layer.1} parent=0 // pred_fallthru
    _
  // Predicated region
  $region18: #{decoding_layer.1} parent=0 // pred_check
    _
  $region19: #{decoding_layer.1} parent=0 // pred_check_branch
    %133 = sbr.rel (0) target = $region21
  $region20: #{decoding_layer.1} parent=0 // pred_region
    _
  $region21: #{decoding_layer.1} parent=0 // pred_fallthru
    _

</llo_original>
